<compile_context>
chip_gen: v5e
topology: v5e:2x2
jax: 0.10.0
libtpu: 0.0.40
codegen_flags: <defaults>
</compile_context>

<pallas_src>
import functools

import jax
import jax.numpy as jnp
import numpy as np
from jax.experimental import pallas as pl
from jax.experimental.pallas import tpu as pltpu

NUM_GROUPS = 2                       # fastMRI group-norm: x.view(b, 2, c//2*h*w)


# --------------------------- generation-aware sizing ---------------------------
def _detect_vmem_capacity():
    try:
        cap = int(pltpu.get_tpu_info().vmem_capacity_bytes)
        if cap > 0:
            return cap
    except Exception:
        pass
    return 128 * 1024 * 1024          # v5e/v6e-like default if query unavailable


_VMEM_CAP = _detect_vmem_capacity()
if _VMEM_CAP <= 64 * 1024 * 1024:     # v7x-like: 64 MiB VMEM per TensorCore
    _BLOCK_BUDGET = 6 * 1024 * 1024   # per-step block bytes (4-8 MiB band)
    _VMEM_LIMIT = 44 * 1024 * 1024
    _FUSED_SLAB_CAP = 4 * 1024 * 1024
else:                                 # v5e / v6e: 128 MiB physical VMEM
    _BLOCK_BUDGET = 4 * 1024 * 1024
    _VMEM_LIMIT = 64 * 1024 * 1024
    _FUSED_SLAB_CAP = 8 * 1024 * 1024


def _pick_fold(c, hw):
    """Sublane-occupancy fold: view (C, HW) as (C*F, HW/F) so C*F == 8 when C < 8."""
    if c >= 8 or 8 % c != 0:
        return 1
    f = 8 // c
    return f if hw % f == 0 else 1


def _pick_tile(hwf, max_lanes):
    """Largest multiple of 128 that divides hwf and is <= max_lanes (None if none)."""
    if hwf % 128 != 0:
        return None
    t = min(hwf, (max_lanes // 128) * 128)
    while t >= 128:
        if hwf % t == 0:
            return t
        t -= 128
    return None


# ------------------- fused single-pass kernel (slab fits VMEM) -------------------
def _fused_kernel(x_ref, w_ref, b_ref, o_ref, *, n_per_group, rows_per_group):
    # x_ref: (1, cf, hwf) slab; w_ref: (cf, cf) = kron(W, I_f); b_ref: (cf, 1).
    cf = x_ref.shape[1]
    x = x_ref[0].astype(jnp.float32)                          # (cf, hwf)

    # Group stats: one cross-lane reduce per batch (not per tile).
    row_sum = jnp.sum(x, axis=1, keepdims=True)               # (cf, 1)
    row_sq = jnp.sum(x * x, axis=1, keepdims=True)            # (cf, 1)
    g0s = jnp.sum(row_sum[:rows_per_group], axis=0, keepdims=True)   # (1, 1)
    g1s = jnp.sum(row_sum[rows_per_group:], axis=0, keepdims=True)
    g0q = jnp.sum(row_sq[:rows_per_group], axis=0, keepdims=True)
    g1q = jnp.sum(row_sq[rows_per_group:], axis=0, keepdims=True)

    n = n_per_group                                           # Python float constant
    m0, m1 = g0s / n, g1s / n
    # torch.std default: ddof=1; no eps (matches torch x/std semantics — a constant
    # group therefore yields inf/NaN exactly like the reference module would).
    s0 = jnp.sqrt((g0q - n * m0 * m0) / (n - 1.0))
    s1 = jnp.sqrt((g1q - n * m1 * m1) / (n - 1.0))

    ridx = jax.lax.broadcasted_iota(jnp.int32, (cf, 1), 0)
    cidx = jax.lax.broadcasted_iota(jnp.int32, (1, cf), 1)
    row0 = ridx < rows_per_group
    col0 = cidx < rows_per_group
    mean_r = jnp.where(row0, m0, m1)                          # (cf, 1) per output row
    std_r = jnp.where(row0, s0, s1)
    mean_c = jnp.where(col0, m0, m1)                          # (1, cf) per input col
    inv_c = jnp.where(col0, 1.0 / s0, 1.0 / s1)

    # Fold norm/de-norm into the conv (tiny cf x cf VPU work).
    w = w_ref[...].astype(jnp.float32)                        # (cf, cf)
    w_fold = std_r * w * inv_c
    b_fold = mean_r + std_r * (b_ref[...].astype(jnp.float32)
                               - jnp.sum(w * (mean_c * inv_c), axis=1, keepdims=True))

    # Apply: one MXU matmul + bias over the whole slab (kept on MXU on purpose).
    y = jnp.dot(w_fold, x, preferred_element_type=jnp.float32) + b_fold
    o_ref[0] = y.astype(o_ref.dtype)


# --------------------------- pass 1: streaming stats ---------------------------
def _stats_kernel(x_ref, sum_ref, sq_ref, *, chunk, n_chunks):
    # x_ref block: (1, cf, tile).  Outputs (1, 1, cf, chunk) keep the same block
    # index across the last grid axis -> VMEM-resident lane-partial accumulators.
    @pl.when(pl.program_id(2) == 0)
    def _():
        sum_ref[...] = jnp.zeros_like(sum_ref)
        sq_ref[...] = jnp.zeros_like(sq_ref)

    if n_chunks == 1:
        c = x_ref[0].astype(jnp.float32)                      # (cf, chunk)
        s, q = c, c * c
    else:
        cf = x_ref.shape[1]

        def body(k, carry):                                   # pure vld + vadd/vmul
            s, q = carry
            off = pl.multiple_of(k * chunk, chunk)
            c = x_ref[0, :, pl.ds(off, chunk)].astype(jnp.float32)
            return s + c, q + c * c

        init = (jnp.zeros((cf, chunk), jnp.float32),
                jnp.zeros((cf, chunk), jnp.float32))
        s, q = jax.lax.fori_loop(0, n_chunks, body, init)

    sum_ref[0, 0] += s
    sq_ref[0, 0] += q


# ------------------- pass 2: folded conv apply (single sweep) -------------------
def _apply_kernel(x_ref, w_ref, b_ref, o_ref):
    # x_ref: (1, cf, tile); w_ref: (1, cf, cf); b_ref: (1, cf, 1).
    x = x_ref[0].astype(jnp.float32)
    y = jnp.dot(w_ref[0], x, preferred_element_type=jnp.float32) + b_ref[0]
    o_ref[0] = y.astype(o_ref.dtype)


@functools.partial(jax.jit, static_argnames=("force_two_pass", "max_tile_lanes"))
def norm_forward(x, w, bias, force_two_pass=False, max_tile_lanes=None):
    """x: (b, c, h, w) NCHW float32; w: (c, c) 1x1-conv weight; bias: (c,)."""
    b, c, h, wd = x.shape
    hw = h * wd
    half = c // NUM_GROUPS
    n_per_group = float(half * hw)

    f = _pick_fold(c, hw)
    cf, hwf = c * f, hw // f
    rows_per_group = half * f
    x_r = x.reshape(b, cf, hwf)       # free row-major view; sublane-dense for small C

    slab_bytes = cf * hwf * 4

    # ---------------- fused single-pass path (2x |x| HBM traffic) ----------------
    if (not force_two_pass) and slab_bytes <= _FUSED_SLAB_CAP:
        if f > 1:   # batch-independent folded-row layout of the conv params
            w_big = jnp.einsum("oc,fg->ofcg", w,
                               jnp.eye(f, dtype=w.dtype)).reshape(cf, cf)
            bias_big = jnp.repeat(bias, f).reshape(cf, 1)
        else:
            w_big = w
            bias_big = bias.reshape(cf, 1)

        out = pl.pallas_call(
            functools.partial(_fused_kernel, n_per_group=n_per_group,
                              rows_per_group=rows_per_group),
            out_shape=jax.ShapeDtypeStruct((b, cf, hwf), x.dtype),
            grid_spec=pltpu.PrefetchScalarGridSpec(
                num_scalar_prefetch=0,
                grid=(b,),
                in_specs=[pl.BlockSpec((1, cf, hwf), lambda i: (i, 0, 0)),
                          pl.BlockSpec((cf, cf), lambda i: (0, 0)),
                          pl.BlockSpec((cf, 1), lambda i: (0, 0))],
                out_specs=pl.BlockSpec((1, cf, hwf), lambda i: (i, 0, 0))),
            compiler_params=pltpu.CompilerParams(
                dimension_semantics=("parallel",),       # batches -> v7x two TCs
                vmem_limit_bytes=_VMEM_LIMIT),
        )(x_r, w_big, bias_big)
        return out.reshape(b, c, h, wd)

    # -------------------- two-pass streaming fallback (large slabs) --------------
    budget_lanes = max_tile_lanes if max_tile_lanes is not None else \
        max(128, _BLOCK_BUDGET // (cf * 4))
    tile = _pick_tile(hwf, budget_lanes)
    hwf_p = hwf
    if tile is None:
        # Ragged hw: zero-pad to a multiple of a big tile.  Zeros are neutral for
        # sum/sumsq; the padded tail of the pass-2 output is sliced off below.
        tile = min((budget_lanes // 128) * 128, ((hwf + 127) // 128) * 128)
        tile = max(tile, 128)
        hwf_p = ((hwf + tile - 1) // tile) * tile
        x_r = jnp.pad(x_r, ((0, 0), (0, 0), (0, hwf_p - hwf)))
    n_tiles = hwf_p // tile

    chunk = 512 if tile % 512 == 0 else 128       # lane-partial accumulator width
    n_chunks = tile // chunk

    # Second parallel axis so the stats sweep uses both v7x TensorCores at small b.
    n_split = 2 if (n_tiles % 2 == 0 and n_tiles >= 2) else 1
    tiles_per_split = n_tiles // n_split

    sums, sqs = pl.pallas_call(
        functools.partial(_stats_kernel, chunk=chunk, n_chunks=n_chunks),
        out_shape=(jax.ShapeDtypeStruct((b, n_split, cf, chunk), jnp.float32),
                   jax.ShapeDtypeStruct((b, n_split, cf, chunk), jnp.float32)),
        grid_spec=pltpu.PrefetchScalarGridSpec(
            num_scalar_prefetch=0,
            grid=(b, n_split, tiles_per_split),
            in_specs=[pl.BlockSpec(
                (1, cf, tile),
                lambda i, j, k: (i, 0, j * tiles_per_split + k))],
            out_specs=(pl.BlockSpec((1, 1, cf, chunk), lambda i, j, k: (i, j, 0, 0)),
                       pl.BlockSpec((1, 1, cf, chunk), lambda i, j, k: (i, j, 0, 0)))),
        compiler_params=pltpu.CompilerParams(
            dimension_semantics=("parallel", "parallel", "arbitrary"),
            vmem_limit_bytes=_VMEM_LIMIT),
    )(x_r)

    # ---------- tiny finalize + algebraic fold (O(b*c^2), plain XLA) ----------
    ch_sum = jnp.sum(sums, axis=(1, 3)).reshape(b, c, f).sum(axis=2)   # (b, c)
    ch_sq = jnp.sum(sqs, axis=(1, 3)).reshape(b, c, f).sum(axis=2)
    g_sum = ch_sum.reshape(b, NUM_GROUPS, half).sum(axis=2)            # (b, G)
    g_sq = ch_sq.reshape(b, NUM_GROUPS, half).sum(axis=2)
    g_mean = g_sum / n_per_group
    g_var = (g_sq - n_per_group * g_mean * g_mean) / (n_per_group - 1.0)
    g_std = jnp.sqrt(g_var)                           # ddof=1, no eps (torch parity)
    mean_c = jnp.repeat(g_mean, half, axis=1)         # (b, c)
    std_c = jnp.repeat(g_std, half, axis=1)
    inv_std_c = 1.0 / std_c

    # out = std_o*(W @ (x-mu)/sigma + bias) + mu_o  ==  W' @ x + b'
    w_fold = std_c[:, :, None] * w[None, :, :] * inv_std_c[:, None, :]        # (b,c,c)
    b_fold = mean_c + std_c * (bias[None, :]
                               - jnp.einsum("oc,bc->bo", w, mean_c * inv_std_c))

    if f > 1:   # expand to folded-row layout: W_big = kron(W', I_f), b_big = repeat
        eye_f = jnp.eye(f, dtype=w_fold.dtype)
        w_app = jnp.einsum("boc,fg->bofcg", w_fold, eye_f).reshape(b, cf, cf)
        b_app = jnp.repeat(b_fold, f, axis=1)
    else:
        w_app, b_app = w_fold, b_fold
    b_app = b_app.reshape(b, cf, 1)

    # ---------- pass 2: single streamed matmul + bias sweep ----------
    out = pl.pallas_call(
        _apply_kernel,
        out_shape=jax.ShapeDtypeStruct((b, cf, hwf_p), x.dtype),
        grid_spec=pltpu.PrefetchScalarGridSpec(
            num_scalar_prefetch=0,
            grid=(b, n_tiles),
            in_specs=[pl.BlockSpec((1, cf, tile), lambda i, j: (i, 0, j)),
                      pl.BlockSpec((1, cf, cf), lambda i, j: (i, 0, 0)),
                      pl.BlockSpec((1, cf, 1), lambda i, j: (i, 0, 0))],
            out_specs=pl.BlockSpec((1, cf, tile), lambda i, j: (i, 0, j))),
        compiler_params=pltpu.CompilerParams(
            dimension_semantics=("parallel", "parallel"),   # independent -> 2 TCs
            vmem_limit_bytes=_VMEM_LIMIT),
    )(x_r, w_app, b_app)

    if hwf_p != hwf:
        out = out[:, :, :hwf]
    return out.reshape(b, c, h, wd)


def norm_forward_ref(x, w, bias):
    """Pure-JAX reference mirroring the PyTorch `norm(..., 'group', True, True)`."""
    b, c, h, wd = x.shape
    half = c // NUM_GROUPS
    xg = x.reshape(b, NUM_GROUPS, half * h * wd)
    mean = jnp.mean(xg, axis=2)                                  # (b, 2)
    std = jnp.std(xg, axis=2, ddof=1)                            # (b, 2) unbiased
    mean = jnp.repeat(mean, half, axis=1).reshape(b, c, 1, 1)
    std = jnp.repeat(std, half, axis=1).reshape(b, c, 1, 1)
    xn = (x - mean) / std
    y = jnp.einsum("oc,bchw->bohw", w, xn) + bias.reshape(1, c, 1, 1)
    return y * std + mean


if __name__ == "__main__":
    key = jax.random.PRNGKey(0)
    kx, kw, kb = jax.random.split(key, 3)

    b, c, h, w = 2, 4, 16, 16
    x = jax.random.normal(kx, (b, c, h, w), dtype=jnp.float32) * 3.0 + 1.5
    # deterministic synthetic "model" params: 1x1 conv, c_out == c_in == c
    W = 0.1 * jax.random.normal(kw, (c, c), dtype=jnp.float32)
    bias = 0.05 * jax.random.normal(kb, (c,), dtype=jnp.float32)

    ref = norm_forward_ref(x, W, bias)

    # default (fused single-pass) path
    out_fused = jax.block_until_ready(norm_forward(x, W, bias))
    np.testing.assert_allclose(np.asarray(out_fused), np.asarray(ref),
                               rtol=2e-4, atol=2e-4)

    # two-pass streaming path on the same shape
    out_2p = jax.block_until_ready(norm_forward(x, W, bias, force_two_pass=True))
    np.testing.assert_allclose(np.asarray(out_2p), np.asarray(ref),
                               rtol=2e-4, atol=2e-4)

    # exercise the large-slab fallback machinery (multi-tile grid, split stats
    # axis, in-kernel chunk loop) at a small size by capping the tile lanes
    b2, c2, h2, w2 = 1, 8, 64, 64
    k2x, k2w, k2b = jax.random.split(jax.random.PRNGKey(1), 3)
    x2 = jax.random.normal(k2x, (b2, c2, h2, w2), dtype=jnp.float32) * 2.0 - 0.5
    W2 = 0.1 * jax.random.normal(k2w, (c2, c2), dtype=jnp.float32)
    b2ias = 0.05 * jax.random.normal(k2b, (c2,), dtype=jnp.float32)
    ref2 = norm_forward_ref(x2, W2, b2ias)
    out2 = jax.block_until_ready(
        norm_forward(x2, W2, b2ias, force_two_pass=True, max_tile_lanes=1024))
    np.testing.assert_allclose(np.asarray(out2), np.asarray(ref2),
                               rtol=2e-4, atol=2e-4)

    print("KERNEL_OK")
</pallas_src>

<mosaic_0001>
module attributes {stable_mosaic.version = 11 : i64} {
  func.func @_fused_kernel(%arg0: i32, %arg1: memref<1x8x128xf32, #tpu.memory_space<vmem>>, %arg2: memref<8x8xf32, #tpu.memory_space<vmem>>, %arg3: memref<8x1xf32, #tpu.memory_space<vmem>>, %arg4: memref<1x8x128xf32, #tpu.memory_space<vmem>>) attributes {dimension_semantics = [#tpu.dimension_semantics<parallel>], iteration_bounds = array<i64: 2>, scalar_prefetch = 0 : i64, scratch_operands = 0 : i64, tpu.core_type = #tpu.core_type<tc>, window_params = [{transform_indices = @transform_0, window_bounds = array<i64: 1, 8, 128>}, {pipeline_mode = #tpu.pipeline_mode<synchronous>, transform_indices = @transform_1, window_bounds = array<i64: 8, 8>}, {pipeline_mode = #tpu.pipeline_mode<synchronous>, transform_indices = @transform_2, window_bounds = array<i64: 8, 1>}, {transform_indices = @transform_3, window_bounds = array<i64: 1, 8, 128>}]} {
    %c0 = arith.constant 0 : index
    %c0_0 = arith.constant 0 : index
    %c0_1 = arith.constant 0 : index
    %0 = vector.load %arg1[%c0, %c0_0, %c0_1] : memref<1x8x128xf32, #tpu.memory_space<vmem>>, vector<1x8x128xf32>
    %1 = vector.shape_cast %0 : vector<1x8x128xf32> to vector<8x128xf32>
    %cst = arith.constant dense<0.000000e+00> : vector<8xf32>
    %2 = vector.multi_reduction <add>, %1, %cst [1] : vector<8x128xf32> to vector<8xf32>
    %3 = vector.shape_cast %2 : vector<8xf32> to vector<8x1xf32>
    %4 = arith.mulf %1, %1 : vector<8x128xf32>
    %cst_2 = arith.constant dense<0.000000e+00> : vector<8xf32>
    %5 = vector.multi_reduction <add>, %4, %cst_2 [1] : vector<8x128xf32> to vector<8xf32>
    %6 = vector.shape_cast %5 : vector<8xf32> to vector<8x1xf32>
    %7 = vector.extract_strided_slice %3 {offsets = [0, 0], sizes = [4, 1], strides = [1, 1]} : vector<8x1xf32> to vector<4x1xf32>
    %cst_3 = arith.constant dense<0.000000e+00> : vector<1xf32>
    %8 = vector.multi_reduction <add>, %7, %cst_3 [0] : vector<4x1xf32> to vector<1xf32>
    %9 = vector.shape_cast %8 : vector<1xf32> to vector<1x1xf32>
    %10 = vector.extract_strided_slice %3 {offsets = [4, 0], sizes = [4, 1], strides = [1, 1]} : vector<8x1xf32> to vector<4x1xf32>
    %cst_4 = arith.constant dense<0.000000e+00> : vector<1xf32>
    %11 = vector.multi_reduction <add>, %10, %cst_4 [0] : vector<4x1xf32> to vector<1xf32>
    %12 = vector.shape_cast %11 : vector<1xf32> to vector<1x1xf32>
    %13 = vector.extract_strided_slice %6 {offsets = [0, 0], sizes = [4, 1], strides = [1, 1]} : vector<8x1xf32> to vector<4x1xf32>
    %cst_5 = arith.constant dense<0.000000e+00> : vector<1xf32>
    %14 = vector.multi_reduction <add>, %13, %cst_5 [0] : vector<4x1xf32> to vector<1xf32>
    %15 = vector.shape_cast %14 : vector<1xf32> to vector<1x1xf32>
    %16 = vector.extract_strided_slice %6 {offsets = [4, 0], sizes = [4, 1], strides = [1, 1]} : vector<8x1xf32> to vector<4x1xf32>
    %cst_6 = arith.constant dense<0.000000e+00> : vector<1xf32>
    %17 = vector.multi_reduction <add>, %16, %cst_6 [0] : vector<4x1xf32> to vector<1xf32>
    %18 = vector.shape_cast %17 : vector<1xf32> to vector<1x1xf32>
    %cst_7 = arith.constant 5.120000e+02 : f32
    %19 = vector.broadcast %cst_7 : f32 to vector<1x1xf32>
    %20 = arith.divf %9, %19 : vector<1x1xf32>
    %cst_8 = arith.constant 5.120000e+02 : f32
    %21 = vector.broadcast %cst_8 : f32 to vector<1x1xf32>
    %22 = arith.divf %12, %21 : vector<1x1xf32>
    %cst_9 = arith.constant 5.120000e+02 : f32
    %23 = vector.broadcast %cst_9 : f32 to vector<1x1xf32>
    %24 = arith.mulf %23, %20 : vector<1x1xf32>
    %25 = arith.mulf %24, %20 : vector<1x1xf32>
    %26 = arith.subf %15, %25 : vector<1x1xf32>
    %cst_10 = arith.constant 5.110000e+02 : f32
    %27 = vector.broadcast %cst_10 : f32 to vector<1x1xf32>
    %28 = arith.divf %26, %27 : vector<1x1xf32>
    %29 = math.sqrt %28 : vector<1x1xf32>
    %cst_11 = arith.constant 5.120000e+02 : f32
    %30 = vector.broadcast %cst_11 : f32 to vector<1x1xf32>
    %31 = arith.mulf %30, %22 : vector<1x1xf32>
    %32 = arith.mulf %31, %22 : vector<1x1xf32>
    %33 = arith.subf %18, %32 : vector<1x1xf32>
    %cst_12 = arith.constant 5.110000e+02 : f32
    %34 = vector.broadcast %cst_12 : f32 to vector<1x1xf32>
    %35 = arith.divf %33, %34 : vector<1x1xf32>
    %36 = math.sqrt %35 : vector<1x1xf32>
    %37 = tpu.iota {dimensions = array<i32: 0>} : vector<8x1xi32>
    %38 = tpu.iota {dimensions = array<i32: 1>} : vector<1x8xi32>
    %c4_i32 = arith.constant 4 : i32
    %39 = vector.broadcast %c4_i32 : i32 to vector<8x1xi32>
    %40 = arith.cmpi slt, %37, %39 : vector<8x1xi32>
    %c4_i32_13 = arith.constant 4 : i32
    %41 = vector.broadcast %c4_i32_13 : i32 to vector<1x8xi32>
    %42 = arith.cmpi slt, %38, %41 : vector<1x8xi32>
    %43 = vector.shape_cast %20 : vector<1x1xf32> to vector<1x1xf32>
    %44 = vector.broadcast %43 : vector<1x1xf32> to vector<8x1xf32>
    %45 = vector.shape_cast %22 : vector<1x1xf32> to vector<1x1xf32>
    %46 = vector.broadcast %45 : vector<1x1xf32> to vector<8x1xf32>
    %47 = arith.select %40, %44, %46 : vector<8x1xi1>, vector<8x1xf32>
    %48 = vector.shape_cast %29 : vector<1x1xf32> to vector<1x1xf32>
    %49 = vector.broadcast %48 : vector<1x1xf32> to vector<8x1xf32>
    %50 = vector.shape_cast %36 : vector<1x1xf32> to vector<1x1xf32>
    %51 = vector.broadcast %50 : vector<1x1xf32> to vector<8x1xf32>
    %52 = arith.select %40, %49, %51 : vector<8x1xi1>, vector<8x1xf32>
    %53 = vector.shape_cast %20 : vector<1x1xf32> to vector<1x1xf32>
    %54 = vector.broadcast %53 : vector<1x1xf32> to vector<1x8xf32>
    %55 = vector.shape_cast %22 : vector<1x1xf32> to vector<1x1xf32>
    %56 = vector.broadcast %55 : vector<1x1xf32> to vector<1x8xf32>
    %57 = arith.select %42, %54, %56 : vector<1x8xi1>, vector<1x8xf32>
    %cst_14 = arith.constant 1.000000e+00 : f32
    %58 = vector.broadcast %cst_14 : f32 to vector<1x1xf32>
    %59 = arith.divf %58, %29 : vector<1x1xf32>
    %cst_15 = arith.constant 1.000000e+00 : f32
    %60 = vector.broadcast %cst_15 : f32 to vector<1x1xf32>
    %61 = arith.divf %60, %36 : vector<1x1xf32>
    %62 = vector.shape_cast %59 : vector<1x1xf32> to vector<1x1xf32>
    %63 = vector.broadcast %62 : vector<1x1xf32> to vector<1x8xf32>
    %64 = vector.shape_cast %61 : vector<1x1xf32> to vector<1x1xf32>
    %65 = vector.broadcast %64 : vector<1x1xf32> to vector<1x8xf32>
    %66 = arith.select %42, %63, %65 : vector<1x8xi1>, vector<1x8xf32>
    %c0_16 = arith.constant 0 : index
    %c0_17 = arith.constant 0 : index
    %67 = vector.load %arg2[%c0_16, %c0_17] : memref<8x8xf32, #tpu.memory_space<vmem>>, vector<8x8xf32>
    %68 = vector.broadcast %52 : vector<8x1xf32> to vector<8x8xf32>
    %69 = arith.mulf %68, %67 : vector<8x8xf32>
    %70 = vector.broadcast %66 : vector<1x8xf32> to vector<8x8xf32>
    %71 = arith.mulf %69, %70 : vector<8x8xf32>
    %c0_18 = arith.constant 0 : index
    %c0_19 = arith.constant 0 : index
    %72 = vector.load %arg3[%c0_18, %c0_19] : memref<8x1xf32, #tpu.memory_space<vmem>>, vector<8x1xf32>
    %73 = arith.mulf %57, %66 : vector<1x8xf32>
    %74 = vector.broadcast %73 : vector<1x8xf32> to vector<8x8xf32>
    %75 = arith.mulf %67, %74 : vector<8x8xf32>
    %cst_20 = arith.constant dense<0.000000e+00> : vector<8xf32>
    %76 = vector.multi_reduction <add>, %75, %cst_20 [1] : vector<8x8xf32> to vector<8xf32>
    %77 = vector.shape_cast %76 : vector<8xf32> to vector<8x1xf32>
    %78 = arith.subf %72, %77 : vector<8x1xf32>
    %79 = arith.mulf %52, %78 : vector<8x1xf32>
    %80 = arith.addf %47, %79 : vector<8x1xf32>
    %cst_21 = arith.constant dense<0.000000e+00> : vector<8x128xf32>
    %81 = tpu.matmul %71, %1, %cst_21 {dimension_numbers = #tpu.dot_dimension_numbers<[1], [0], [0], [1], [0, 0, 1, 1], [], []>} : vector<8x8xf32>, vector<8x128xf32>, vector<8x128xf32> -> vector<8x128xf32>
    %82 = vector.broadcast %80 : vector<8x1xf32> to vector<8x128xf32>
    %83 = arith.addf %81, %82 : vector<8x128xf32>
    %c0_22 = arith.constant 0 : index
    %c0_23 = arith.constant 0 : index
    %c0_24 = arith.constant 0 : index
    %84 = vector.load %arg4[%c0_22, %c0_23, %c0_24] : memref<1x8x128xf32, #tpu.memory_space<vmem>>, vector<1x8x128xf32>
    %85 = vector.shape_cast %84 : vector<1x8x128xf32> to vector<8x128xf32>
    %86 = vector.shape_cast %83 : vector<8x128xf32> to vector<1x8x128xf32>
    tpu.vector_store %arg4[%c0_22, %c0_23, %c0_24], %86 {strides = array<i32>} : memref<1x8x128xf32, #tpu.memory_space<vmem>>, vector<1x8x128xf32>,
    return
  }
  func.func @transform_0(%arg0: i32) -> (i32, i32, i32) {
    %c0_i32 = arith.constant 0 : i32
    %c0_i32_0 = arith.constant 0 : i32
    %c0_i32_1 = arith.constant 0 : i32
    return %arg0, %c0_i32, %c0_i32_0 : i32, i32, i32
  }
  func.func @transform_1(%arg0: i32) -> (i32, i32) {
    %c0_i32 = arith.constant 0 : i32
    %c0_i32_0 = arith.constant 0 : i32
    %c0_i32_1 = arith.constant 0 : i32
    return %c0_i32, %c0_i32_0 : i32, i32
  }
  func.func @transform_2(%arg0: i32) -> (i32, i32) {
    %c0_i32 = arith.constant 0 : i32
    %c0_i32_0 = arith.constant 0 : i32
    %c0_i32_1 = arith.constant 0 : i32
    return %c0_i32, %c0_i32_0 : i32, i32
  }
  func.func @transform_3(%arg0: i32) -> (i32, i32, i32) {
    %c0_i32 = arith.constant 0 : i32
    %c0_i32_0 = arith.constant 0 : i32
    %c0_i32_1 = arith.constant 0 : i32
    return %arg0, %c0_i32, %c0_i32_0 : i32, i32, i32
  }
}

</mosaic_0001>

<llo_original>
// kernel: norm_forward.1
$region0: #{norm_forward.1}
  #allocation0 [shape = 'u32[]', space=smem, size = 0x4, offset = 0x4, fixed_abs, tag = 'smem constant byte address 0x4 - core index']
  #allocation1 [shape = 'u32[72,128]{1,0:T(1,128)}', space=vmem, size = 0x9000, scoped, tag = 'internal scratch']
  %s0 = inlined_call_operand.vmem [shape: f32[2,8,128], index: 0, kind: input, shape index: {}]
  %s1 = inlined_call_operand.vmem [shape: f32[8,8], index: 1, kind: input, shape index: {}]
  %s2 = inlined_call_operand.vmem [shape: f32[8,1], index: 2, kind: input, shape index: {}]
  %s3 = inlined_call_operand.vmem [shape: f32[2,8,128], index: 3, kind: output, shape index: {}]
  %s4 = sld [smem:[#allocation0]]
  $region45: #{norm_forward.1} parent=0
    _
  %s6 = ssub.s32 1, %s4
  %s7 = scalar_select 0, %s6, %s4
  loop: start=0, step=1, limit=4
  $region2: #{norm_forward.1} parent=0 // loop_pre_header
    _
  $region3: #{norm_forward.1} parent=0 // loop_header
    %s9 = sphi 0, %s13
    %p10 = scmp.ge.s32.totalorder %s9, 4
    %s19 = sphi 0, %s21
    %s22 = sphi 0, %s19
    %s23 = sphi 0, %s22
    %s39 = sphi 0, %s23
    %s43 = sphi 0, %s43
    %s45 = sphi 0, %s43
    %s46 = sphi 0, %s45
    %s60 = sphi 0, %s46
    %s64 = sphi 0, %s64
    %s66 = sphi 0, %s64
    %s67 = sphi 0, %s66
    %s81 = sphi 0, %s67
    %s87 = sphi 0, %s89
    %s90 = sphi 0, %s87
    %s91 = sphi 0, %s90
    %s107 = sphi 0, %s91
  $region4: #{norm_forward.1} parent=0 // loop_header_branch
    %12 = sbr.rel (%p10) target = $region8
  $region5: #{norm_forward.1} parent=0 // loop_body
    %s14 = ssub.s32 %s9, 1
    %s15 = ssub.s32 %s9, 2
    %s16 = sadd.s32 %s9, 1
    %s17 = ssub.s32 %s9, %s16
    %p18 = scmp.eq.s32.totalorder %s17, 0
    %s20 = sadd.s32 %s19, 1
    %s21 = scalar_select %p18, %s19, %s20
    %p24 = pneg %p18
    %p25 = scmp.eq.s32.totalorder %s9, 1
    %p26 = por %p24, %p25
    %p27 = scmp.ne.s32.totalorder %s19, %s22
    %p28 = scmp.eq.s32.totalorder %s9, 0
    %p29 = por %p27, %p28
    %p30 = scmp.ne.s32.totalorder %s19, %s22
    %p31 = scmp.eq.s32.totalorder %s14, 1
    %p32 = por %p30, %p31
    %p33 = scmp.ne.s32.totalorder %s22, %s23
    %p34 = scmp.eq.s32.totalorder %s14, 0
    %p35 = por %p33, %p34
    %p36 = scmp.ne.s32.totalorder %s22, %s23
    %p37 = scmp.eq.s32.totalorder %s15, 1
    %p38 = por %p36, %p37
    %p40 = scmp.ne.s32.totalorder %s23, %s39
    %p41 = scmp.eq.s32.totalorder %s15, 0
    %p42 = por %p40, %p41
    %s44 = sadd.s32 %s43, 1
    %p47 = scmp.eq.s32.totalorder %s9, 1
    %p48 = scmp.ne.s32.totalorder %s43, %s45
    %p49 = scmp.eq.s32.totalorder %s9, 0
    %p50 = por %p48, %p49
    %p51 = scmp.ne.s32.totalorder %s43, %s45
    %p52 = scmp.eq.s32.totalorder %s14, 1
    %p53 = por %p51, %p52
    %p54 = scmp.ne.s32.totalorder %s45, %s46
    %p55 = scmp.eq.s32.totalorder %s14, 0
    %p56 = por %p54, %p55
    %p57 = scmp.ne.s32.totalorder %s45, %s46
    %p58 = scmp.eq.s32.totalorder %s15, 1
    %p59 = por %p57, %p58
    %p61 = scmp.ne.s32.totalorder %s46, %s60
    %p62 = scmp.eq.s32.totalorder %s15, 0
    %p63 = por %p61, %p62
    %s65 = sadd.s32 %s64, 1
    %p68 = scmp.eq.s32.totalorder %s9, 1
    %p69 = scmp.ne.s32.totalorder %s64, %s66
    %p70 = scmp.eq.s32.totalorder %s9, 0
    %p71 = por %p69, %p70
    %p72 = scmp.ne.s32.totalorder %s64, %s66
    %p73 = scmp.eq.s32.totalorder %s14, 1
    %p74 = por %p72, %p73
    %p75 = scmp.ne.s32.totalorder %s66, %s67
    %p76 = scmp.eq.s32.totalorder %s14, 0
    %p77 = por %p75, %p76
    %p78 = scmp.ne.s32.totalorder %s66, %s67
    %p79 = scmp.eq.s32.totalorder %s15, 1
    %p80 = por %p78, %p79
    %p82 = scmp.ne.s32.totalorder %s67, %s81
    %p83 = scmp.eq.s32.totalorder %s15, 0
    %p84 = por %p82, %p83
    %s85 = ssub.s32 %s9, %s16
    %p86 = scmp.eq.s32.totalorder %s85, 0
    %s88 = sadd.s32 %s87, 1
    %s89 = scalar_select %p86, %s87, %s88
    %p92 = pneg %p86
    %p93 = scmp.eq.s32.totalorder %s9, 1
    %p94 = por %p92, %p93
    %p95 = scmp.ne.s32.totalorder %s87, %s90
    %p96 = scmp.eq.s32.totalorder %s9, 0
    %p97 = por %p95, %p96
    %p98 = scmp.ne.s32.totalorder %s87, %s90
    %p99 = scmp.eq.s32.totalorder %s14, 1
    %p100 = por %p98, %p99
    %p101 = scmp.ne.s32.totalorder %s90, %s91
    %p102 = scmp.eq.s32.totalorder %s14, 0
    %p103 = por %p101, %p102
    %p104 = scmp.ne.s32.totalorder %s90, %s91
    %p105 = scmp.eq.s32.totalorder %s15, 1
    %p106 = por %p104, %p105
    %p108 = scmp.ne.s32.totalorder %s91, %s107
    %p109 = scmp.eq.s32.totalorder %s15, 0
    %p110 = por %p108, %p109
    %p111 = scmp.le.s32.totalorder 1, %s9
    %p112 = scmp.lt.s32.totalorder %s9, 3
    %p113 = pnand %p111, %p112
    %p114 = pneg %p113
    // Predicated region
    $region9: #{norm_forward.1} parent=5 // pred_check
      _
    $region10: #{norm_forward.1} parent=5 // pred_check_branch
      %116 = sbr.rel (%p113) target = $region12
    $region11: #{norm_forward.1} parent=5 // pred_region
      %s117 = ssub.s32 %s9, 1
      // Predicated region
      $region13: #{norm_forward.1} parent=11 // pred_check
        %p118 = pneg %p56
      $region14: #{norm_forward.1} parent=11 // pred_check_branch
        %120 = sbr.rel (%p118) target = $region16
      $region15: #{norm_forward.1} parent=11 // pred_region
        _
      $region16: #{norm_forward.1} parent=11 // pred_fallthru
        _
      // Predicated region
      $region17: #{norm_forward.1} parent=11 // pred_check
        %p121 = pneg %p77
      $region18: #{norm_forward.1} parent=11 // pred_check_branch
        %123 = sbr.rel (%p121) target = $region20
      $region19: #{norm_forward.1} parent=11 // pred_region
        _
      $region20: #{norm_forward.1} parent=11 // pred_fallthru
        _
    $region12: #{norm_forward.1} parent=5 // pred_fallthru
      _
    %p124 = scmp.lt.s32.totalorder %s9, 2
    // Predicated region
    $region21: #{norm_forward.1} parent=5 // pred_check
      %p125 = pneg %p124
    $region22: #{norm_forward.1} parent=5 // pred_check_branch
      %127 = sbr.rel (%p125) target = $region24
    $region23: #{norm_forward.1} parent=5 // pred_region
      // Predicated region
      $region25: #{norm_forward.1} parent=23 // pred_check
        %p128 = pneg %p29
      $region26: #{norm_forward.1} parent=23 // pred_check_branch
        %130 = sbr.rel (%p128) target = $region28
      $region27: #{norm_forward.1} parent=23 // pred_region
        %p131 = scmp.lt.s32.totalorder %s9, 1
        %s132 = scalar_select %p131, %s9, 1
        %s133 = smul.addr %s132, 8
        %s134 = scalar_lea.vmem %s0, %s133
      $region28: #{norm_forward.1} parent=23 // pred_fallthru
        _
    $region24: #{norm_forward.1} parent=5 // pred_fallthru
      _
    %p135 = scmp.le.s32.totalorder 1, %s9
    %p136 = scmp.lt.s32.totalorder %s9, 3
    %p137 = pnand %p135, %p136
    %p138 = pneg %p137
    // Predicated region
    $region29: #{norm_forward.1} parent=5 // pred_check
      _
    $region30: #{norm_forward.1} parent=5 // pred_check_branch
      %140 = sbr.rel (%p137) target = $region32
    $region31: #{norm_forward.1} parent=5 // pred_region
      %s141 = ssub.s32 %s9, 1
      %p142 = scmp.lt.s32.totalorder %s14, 1
      %s143 = scalar_select %p142, %s14, 1
      %s144 = smul.addr %s143, 8
      %s145 = scalar_lea.vmem %s0, %s144
      %p146 = pneg %p35
      %p147 = pneg %p32
      %p148 = pneg %p56
      %p149 = pneg %p53
      %p150 = pneg %p77
      %p151 = pneg %p74
      %p152 = pneg %p103
      %p153 = pneg %p100
      %p154 = scmp.lt.s32.totalorder %s14, 1
      %s155 = scalar_select %p154, %s14, 1
      %s156 = smul.addr %s155, 8
      %s157 = scalar_lea.vmem %s3, %s156
      %p158 = scmp.lt.s32.totalorder %s14, 1
      %s159 = scalar_select %p158, %s14, 1
      %s160 = smul.addr %s159, 8
      %s161 = scalar_lea.vmem %s0, %s160
      %p162 = scmp.lt.s32.totalorder %s14, 1
      %s163 = scalar_select %p162, %s14, 1
      %s164 = smul.addr %s163, 8
      %s165 = scalar_lea.vmem %s3, %s164
      %v166 = vld [vmem:[%s161] sm:$0xff]
      %167 = vadd.xlane.f32.xlu0 %v166
      %v168 = vpop.xlane.xlu0 %167
      %v169 = vmul.f32 %v166, %v166
      %170 = vadd.xlane.f32.xlu0 %v169
      %v171 = vpop.xlane.xlu0 %170
      %vm172 = vcmask 1043456
      %v173 = vsel %vm172, %v168, 0.0
      %v174 = vrot.slane %v173, 4
      %v175 = vadd.f32 %v173, %v174
      %v176 = vrot.slane %v175, 2
      %v177 = vadd.f32 %v175, %v176
      %v178 = vrot.slane %v177, 1
      %v179 = vadd.f32 %v177, %v178
      %v181 = vrot.slane %v168, 4
      %v183 = vsel %vm172, %v181, 0.0
      %v184 = vrot.slane %v183, 4
      %v185 = vadd.f32 %v183, %v184
      %v186 = vrot.slane %v185, 2
      %v187 = vadd.f32 %v185, %v186
      %v188 = vrot.slane %v187, 1
      %v189 = vadd.f32 %v187, %v188
      %v190 = vsel %vm172, %v171, 0.0
      %v191 = vrot.slane %v190, 4
      %v192 = vadd.f32 %v190, %v191
      %v193 = vrot.slane %v192, 2
      %v194 = vadd.f32 %v192, %v193
      %v195 = vrot.slane %v194, 1
      %v196 = vadd.f32 %v194, %v195
      %v198 = vrot.slane %v171, 4
      %v200 = vsel %vm172, %v198, 0.0
      %v201 = vrot.slane %v200, 4
      %v202 = vadd.f32 %v200, %v201
      %v203 = vrot.slane %v202, 2
      %v204 = vadd.f32 %v202, %v203
      %v205 = vrot.slane %v204, 1
      %v206 = vadd.f32 %v204, %v205
      %v207 = vrcp.pop 512.0
      %v208 = vmul.f32 512.0, %v207
      %v209 = vsub.f32 1.0, %v208
      %v210 = vmul.f32 %v207, %v209
      %v211 = vadd.f32 %v207, %v210
      %vm212 = vweird.f32 %v207
      %v213 = vsel %vm212, %v207, %v211
      %v214 = vmul.f32 %v179, %v213
      %v215 = vmul.f32 %v189, %v213
      %v216 = vmul.f32 %v214, 512.0
      %v217 = vmul.f32 %v216, %v214
      %v218 = vsub.f32 %v196, %v217
      %v219 = vrcp.pop 511.0
      %v220 = vmul.f32 511.0, %v219
      %v221 = vsub.f32 1.0, %v220
      %v222 = vmul.f32 %v219, %v221
      %v223 = vadd.f32 %v219, %v222
      %vm224 = vweird.f32 %v219
      %v225 = vsel %vm224, %v219, %v223
      %v226 = vmul.f32 %v218, %v225
      %v227 = vrsqrt.pop %v226
      %v228 = vmul.f32 %v227, %v226
      %v229 = vmul.f32 %v228, %v227
      %v230 = vmul.f32 0.5, %v229
      %v231 = vsub.f32 1.5, %v230
      %v232 = vmul.f32 %v227, %v231
      %v233 = vmul.f32 %v226, %v232
      %vm234 = vcmp.eq.f32.partialorder %v226, inf
      %v235 = vsel %vm234, %v226, %v233
      %vm236 = vcmp.eq.f32.partialorder %v226, 0.0
      %v237 = vand.u32 %v226, 2147483648
      %v238 = vsel %vm236, %v237, %v235
      %v239 = vmul.f32 %v215, 512.0
      %v240 = vmul.f32 %v239, %v215
      %v241 = vsub.f32 %v206, %v240
      %v242 = vmul.f32 %v241, %v225
      %v243 = vrsqrt.pop %v242
      %v244 = vmul.f32 %v243, %v242
      %v245 = vmul.f32 %v244, %v243
      %v246 = vmul.f32 0.5, %v245
      %v247 = vsub.f32 1.5, %v246
      %v248 = vmul.f32 %v243, %v247
      %v249 = vmul.f32 %v242, %v248
      %vm250 = vcmp.eq.f32.partialorder %v242, inf
      %v251 = vsel %vm250, %v242, %v249
      %vm252 = vcmp.eq.f32.partialorder %v242, 0.0
      %v253 = vand.u32 %v242, 2147483648
      %v254 = vsel %vm252, %v253, %v251
      %v255 = vlaneseq
      %v256 = vshrl.u32 %v255, 7
      %v257 = vlaneseq
      %v258 = vand.u32 %v257, 127
      %vm259 = vcmp.lt.s32.totalorder %v256, 4
      %vm260 = vcmp.lt.s32.totalorder %v258, 4
      %v261 = vsel %vm259, %v214, %v215
      %v262 = vsel %vm259, %v238, %v254
      %v263 = vsel %vm260, %v214, %v215
      %v264 = vrcp.pop %v238
      %v265 = vmul.f32 %v238, %v264
      %v266 = vsub.f32 1.0, %v265
      %v267 = vmul.f32 %v264, %v266
      %v268 = vadd.f32 %v264, %v267
      %vm269 = vweird.f32 %v238
      %vm270 = vweird.f32 %v264
      %vm271 = vmor %vm269, %vm270
      %v272 = vsel %vm271, %v264, %v268
      %v273 = vand.u32 2147483647, %v238
      %vm274 = vcmp.eq.f32.partialorder %v273, 8.507059e+37
      %v275 = vand.u32 %v238, 2147483648
      %v276 = vor.u32 1.1754944e-38, %v275
      %v277 = vsel %vm274, %v276, %v272
      %v278 = vmul.f32 1.0, %v277
      %v279 = vrcp.pop %v254
      %v280 = vmul.f32 %v254, %v279
      %v281 = vsub.f32 1.0, %v280
      %v282 = vmul.f32 %v279, %v281
      %v283 = vadd.f32 %v279, %v282
      %vm284 = vweird.f32 %v254
      %vm285 = vweird.f32 %v279
      %vm286 = vmor %vm284, %vm285
      %v287 = vsel %vm286, %v279, %v283
      %v288 = vand.u32 2147483647, %v254
      %vm289 = vcmp.eq.f32.partialorder %v288, 8.507059e+37
      %v290 = vand.u32 %v254, 2147483648
      %v291 = vor.u32 1.1754944e-38, %v290
      %v292 = vsel %vm289, %v291, %v287
      %v293 = vmul.f32 1.0, %v292
      %v294 = vsel %vm260, %v278, %v293
      %v295 = vld [vmem:[%s1] sm:$0xff]
      %v296 = vmul.f32 %v262, %v295
      %v297 = vmul.f32 %v296, %v294
      %v298 = vld [vmem:[%s2] sm:$0xff]
      %v299 = vmul.f32 %v263, %v294
      %v300 = vmul.f32 %v295, %v299
      %vm301 = vcmask 64512
      %v302 = vsel %vm301, %v300, 0.0
      %303 = vadd.xlane.f32.xlu0 %v302
      %v304 = vpop.xlane.xlu0 %303
      %v305 = vsub.f32 %v298, %v304
      %v306 = vmul.f32 %v262, %v305
      %v307 = vadd.f32 %v261, %v306
      %309 = vset.pattern.permute.xlu0 0
      %310 = vperm.xlu0 %309, %v307
      %v311 = vpop.permute.xlu0 %310
      %v314 = vsel %vm301, %v297, 0
      %316 = vmatpush.msra.mxu0 0.0
      %317 = vmatpush.msra.mxu0 0.0
      %318 = vmatpush.msra.mxu0 0.0
      %319 = vmatpush.msra.mxu0 0.0
      %320 = vmatpush.msra.mxu0 0.0
      %321 = vmatpush.msra.mxu0 0.0
      %322 = vmatpush.msra.mxu0 0.0
      %323 = vmatpush.msra.mxu0 0.0
      %324 = vmatpush.msra.mxu0 0.0
      %325 = vmatpush.msra.mxu0 0.0
      %326 = vmatpush.msra.mxu0 0.0
      %327 = vmatpush.msra.mxu0 0.0
      %328 = vmatpush.msra.mxu0 0.0
      %329 = vmatpush.msra.mxu0 0.0
      %330 = vmatpush.msra.mxu0 0.0
      %331 = vmatpush.msra.mxu0 %v166
      %332 = vmatmul.f32.gmra.mxu0 %v314
      %v333 = vpop.f32.mrf.mxu0
      %v334 = vadd.f32 %v311, %v333
      %335 = vdwg.mxu0
      %336 = vst [vmem:[%s165] sm:$0xff] %v334
      %p337 = scmp.lt.s32.totalorder %s14, 1
      %s338 = scalar_select %p337, %s14, 1
      %s339 = smul.addr %s338, 8
      %s340 = scalar_lea.vmem %s3, %s339
      // Predicated region
      $region33: #{norm_forward.1} parent=31 // pred_check
        %p341 = pneg %p100
      $region34: #{norm_forward.1} parent=31 // pred_check_branch
        %343 = sbr.rel (%p341) target = $region36
      $region35: #{norm_forward.1} parent=31 // pred_region
        _
      $region36: #{norm_forward.1} parent=31 // pred_fallthru
        _
    $region32: #{norm_forward.1} parent=5 // pred_fallthru
      _
    %p344 = scmp.le.s32.totalorder 2, %s9
    // Predicated region
    $region37: #{norm_forward.1} parent=5 // pred_check
      %p345 = pneg %p344
    $region38: #{norm_forward.1} parent=5 // pred_check_branch
      %347 = sbr.rel (%p345) target = $region40
    $region39: #{norm_forward.1} parent=5 // pred_region
      %s348 = ssub.s32 %s9, 2
      // Predicated region
      $region41: #{norm_forward.1} parent=39 // pred_check
        %p349 = pneg %p106
      $region42: #{norm_forward.1} parent=39 // pred_check_branch
        %351 = sbr.rel (%p349) target = $region44
      $region43: #{norm_forward.1} parent=39 // pred_region
        %p352 = scmp.lt.s32.totalorder %s15, 1
        %s353 = scalar_select %p352, %s15, 1
        %s354 = smul.addr %s353, 8
        %s355 = scalar_lea.vmem %s3, %s354
      $region44: #{norm_forward.1} parent=39 // pred_fallthru
        _
    $region40: #{norm_forward.1} parent=5 // pred_fallthru
      _
  $region6: #{norm_forward.1} parent=0 // loop_footer
    %s13 = sadd.s32 1, %s9
  $region7: #{norm_forward.1} parent=0 // loop_footer_branch
    %8 = sbr.rel target = $region3
  $region8: #{norm_forward.1} parent=0 // loop_exit
    _

</llo_original>
